<compile_context>
chip_gen: v7x
topology: tpu7x:2x2x1
jax: 0.10.0
libtpu: 0.0.40
codegen_flags: <defaults>
</compile_context>

<pallas_src>
import functools

import jax
import jax.numpy as jnp
from jax.experimental import pallas as pl
from jax.experimental.pallas import tpu as pltpu


def _round_up(x, m):
    return ((x + m - 1) // m) * m


def _vmem_cap_bytes():
    """Generation-aware VMEM cap: ~80% of physical, leaving Mosaic headroom."""
    try:
        phys = int(pltpu.get_tpu_info().vmem_capacity_bytes)
    except Exception:
        phys = 64 << 20  # conservative: v7x per-TensorCore VMEM
    return max(16 << 20, int(phys * 0.8))


# --------------------------------------------------------------------------
# Kernel A: h2 = softplus_thr5( tanh( x @ W1^T ) @ W2^T )
# grid = (batch tiles, gene chunks); layer-1 reduction streamed over genes.
# --------------------------------------------------------------------------
def _hidden_kernel(x_ref, w1t_ref, w2t_ref, h2_ref, acc_ref):
    k = pl.program_id(1)

    @pl.when(k == 0)
    def _():
        acc_ref[...] = jnp.zeros_like(acc_ref)

    # Layer-1 partial product for this gene chunk (f32 accumulation on MXU).
    acc_ref[...] += jnp.dot(x_ref[...], w1t_ref[...],
                            preferred_element_type=jnp.float32)

    @pl.when(k == pl.num_programs(1) - 1)
    def _():
        # Layer 1 activation + Layer 2 (hidden -> hidden) + Softplus(threshold=5)
        h1 = jnp.tanh(acc_ref[...]).astype(w2t_ref.dtype)
        z2 = jnp.dot(h1, w2t_ref[...], preferred_element_type=jnp.float32)
        # PyTorch Softplus(beta=1, threshold=5): z if z > 5 else log1p(exp(z)).
        # Clamp the exp argument so the unselected branch never produces inf.
        h2 = jnp.where(z2 > 5.0, z2, jnp.log1p(jnp.exp(jnp.minimum(z2, 5.0))))
        # Store in the matmul dtype -> layer 3 consumes it with no per-tile cast.
        h2_ref[...] = h2.astype(h2_ref.dtype)


# --------------------------------------------------------------------------
# Kernel B: y = sigmoid( h2 @ W3^T )
# grid = (peak tiles, batch tiles); peaks outermost so W3 is read exactly once.
# --------------------------------------------------------------------------
def _peaks_kernel(h2_ref, w3t_ref, o_ref):
    z3 = jnp.dot(h2_ref[...], w3t_ref[...], preferred_element_type=jnp.float32)
    # sigmoid via tanh: one EUP op + cheap VALU, no exp overflow, no divide.
    o_ref[...] = (0.5 * jnp.tanh(0.5 * z3) + 0.5).astype(o_ref.dtype)


def prepare_chromatin_params(w1, w2, w3, *, dtype=None,
                             block_peaks=2048, block_genes=1024):
    """One-time weight prep (outside the per-call jitted path).

    w1: (hidden, n_genes), w2: (hidden, hidden), w3: (n_peaks, hidden).
    Transposes and zero-pads the weights so every lane dim is a multiple of
    128 and the gene / peak axes divide into whole tiles, optionally casting
    to `dtype` (e.g. jnp.bfloat16 for the fast path).

    Zero-padding invariants the kernels rely on:
      * padded columns of W1^T / W2^T are zero -> padded hidden lanes of h2
        hold softplus(0) = ln 2, which is harmless because
      * padded rows of W3^T are zero -> those lanes contribute nothing to z3.

    Returns (w1t, w2t, w3t, static_cfg) where static_cfg is passed as
    **kwargs to chromatin_forward.
    """
    if dtype is None:
        dtype = w1.dtype
    k, g = w1.shape
    p = w3.shape[0]

    k_pad = _round_up(k, 128)
    block_g = min(_round_up(block_genes, 128), _round_up(g, 128))
    g_pad = _round_up(g, block_g)
    block_p = min(_round_up(block_peaks, 128), _round_up(p, 128))
    p_pad = _round_up(p, block_p)

    w1t = jnp.zeros((g_pad, k_pad), dtype).at[:g, :k].set(w1.T.astype(dtype))
    w2t = jnp.zeros((k_pad, k_pad), dtype).at[:k, :k].set(w2.T.astype(dtype))
    w3t = jnp.zeros((k_pad, p_pad), dtype).at[:k, :p].set(w3.T.astype(dtype))
    cfg = dict(n_peaks=p, block_p=block_p, block_g=block_g)
    return w1t, w2t, w3t, cfg


@functools.partial(
    jax.jit,
    static_argnames=("n_peaks", "block_p", "block_g", "block_batch", "out_dtype"))
def chromatin_forward(x, w1t, w2t, w3t, *, n_peaks, block_p, block_g,
                      block_batch=512, out_dtype=None):
    """x: (B, n_genes); weights as produced by prepare_chromatin_params."""
    B, g = x.shape
    g_pad, k_pad = w1t.shape
    p_pad = w3t.shape[1]
    compute_dtype = w1t.dtype
    out_dtype = x.dtype if out_dtype is None else out_dtype

    # Batch tile: multiple of 16 (f32 & bf16 sublane packing), capped at
    # block_batch. When B allows, target >= 2 batch tiles so the parallel
    # batch axis can span both v7x TensorCores.
    if B > 16:
        target_b = _round_up((B + 1) // 2, 16)
    else:
        target_b = _round_up(max(B, 1), 16)
    block_b = max(16, min(block_batch, target_b))
    b_pad = _round_up(B, block_b)

    if (b_pad, g_pad) == (B, g) and x.dtype == compute_dtype:
        x_pad = x
    else:
        x_pad = jnp.zeros((b_pad, g_pad), compute_dtype) \
                   .at[:B, :g].set(x.astype(compute_dtype))

    nb = b_pad // block_b
    nk = g_pad // block_g
    nj = p_pad // block_p

    itm = jnp.dtype(compute_dtype).itemsize
    out_itm = jnp.dtype(out_dtype).itemsize
    vmem_cap = _vmem_cap_bytes()

    # ---------------- Kernel A: hidden activation (genes streamed) ----------
    a_footprint = (2 * block_b * block_g * itm       # x chunk (double-buffered)
                   + 2 * block_g * k_pad * itm       # W1^T chunk
                   + 1 * k_pad * k_pad * itm         # W2^T (single buffer)
                   + 2 * block_b * k_pad * itm       # h2 output tile
                   + block_b * k_pad * 4)            # f32 accumulator scratch
    a_cost = pl.CostEstimate(
        flops=2 * b_pad * k_pad * (g_pad + k_pad),
        transcendentals=2 * b_pad * k_pad,            # tanh + exp per hidden elem
        bytes_accessed=(b_pad * g_pad * itm           # x read once
                        + nb * g_pad * k_pad * itm    # W1^T re-read per batch tile
                        + k_pad * k_pad * itm         # W2^T
                        + b_pad * k_pad * itm))       # h2 write

    h2 = pl.pallas_call(
        _hidden_kernel,
        out_shape=jax.ShapeDtypeStruct((b_pad, k_pad), compute_dtype),
        grid_spec=pltpu.PrefetchScalarGridSpec(
            num_scalar_prefetch=0,
            grid=(nb, nk),
            in_specs=[
                # x: (batch tile, gene chunk)
                pl.BlockSpec((block_b, block_g), lambda i, k: (i, k)),
                # W1^T: gene chunk, streamed over k
                pl.BlockSpec((block_g, k_pad), lambda i, k: (k, 0)),
                # W2^T: resident, constant index map -> one buffer is enough.
                pl.BlockSpec((k_pad, k_pad), lambda i, k: (0, 0),
                             pipeline_mode=pl.Buffered(1)),
            ],
            out_specs=pl.BlockSpec((block_b, k_pad), lambda i, k: (i, 0)),
            scratch_shapes=[pltpu.VMEM((block_b, k_pad), jnp.float32)],
        ),
        compiler_params=pltpu.CompilerParams(
            # Gene axis is a reduction into the scratch accumulator.
            dimension_semantics=("parallel", "arbitrary"),
            vmem_limit_bytes=int(min(vmem_cap, max(2 * a_footprint, 16 << 20))),
        ),
        cost_estimate=a_cost,
    )(x_pad, w1t, w2t)

    # ---------------- Kernel B: peaks projection + sigmoid ------------------
    b_footprint = (2 * block_b * k_pad * itm
                   + 2 * k_pad * block_p * itm
                   + 2 * block_b * block_p * out_itm)
    b_cost = pl.CostEstimate(
        flops=2 * b_pad * k_pad * p_pad,
        transcendentals=b_pad * p_pad,                 # tanh-form sigmoid
        bytes_accessed=(nj * b_pad * k_pad * itm       # h2 re-read per peaks tile
                        + k_pad * p_pad * itm          # W3^T read exactly once
                        + b_pad * p_pad * out_itm))    # output write

    out = pl.pallas_call(
        _peaks_kernel,
        out_shape=jax.ShapeDtypeStruct((b_pad, p_pad), out_dtype),
        grid_spec=pltpu.PrefetchScalarGridSpec(
            num_scalar_prefetch=0,
            grid=(nj, nb),   # peaks outermost: W3 tile stays resident over batch
            in_specs=[
                pl.BlockSpec((block_b, k_pad), lambda j, i: (i, 0)),
                pl.BlockSpec((k_pad, block_p), lambda j, i: (0, j)),
            ],
            out_specs=pl.BlockSpec((block_b, block_p), lambda j, i: (i, j)),
        ),
        compiler_params=pltpu.CompilerParams(
            dimension_semantics=("parallel", "parallel"),
            vmem_limit_bytes=int(min(vmem_cap, max(2 * b_footprint, 16 << 20))),
        ),
        cost_estimate=b_cost,
    )(h2, w3t)

    return out[:B, :n_peaks]


def reference_forward(x, w1, w2, w3):
    """Pure-JAX reference of the PyTorch forward (eval mode)."""
    h1 = jnp.tanh(x @ w1.T)
    z2 = h1 @ w2.T
    h2 = jnp.where(z2 > 5.0, z2, jnp.log1p(jnp.exp(jnp.minimum(z2, 5.0))))
    z3 = h2 @ w3.T
    return jax.nn.sigmoid(z3)


if __name__ == "__main__":
    # Small shapes consistent with ChromatinModule(n_genes, n_peaks, hidden).
    batch, n_genes, hidden, n_peaks = 8, 16, 32, 64

    key = jax.random.PRNGKey(0)
    kx, k1, k2, k3 = jax.random.split(key, 4)

    x = jax.random.normal(kx, (batch, n_genes), dtype=jnp.float32)
    bg = 1.0 / n_genes ** 0.5
    bk = 1.0 / hidden ** 0.5
    w1 = jax.random.uniform(k1, (hidden, n_genes), jnp.float32, -bg, bg)
    w2 = jax.random.uniform(k2, (hidden, hidden), jnp.float32, -bk, bk)
    w3 = jax.random.uniform(k3, (n_peaks, hidden), jnp.float32, -bk, bk)

    ref = reference_forward(x, w1, w2, w3)

    # f32 operand path: near-exact vs reference.
    w1t, w2t, w3t, cfg = prepare_chromatin_params(w1, w2, w3)
    out = chromatin_forward(x, w1t, w2t, w3t, **cfg)
    out = jax.block_until_ready(out)
    assert out.shape == (batch, n_peaks)
    assert jnp.allclose(out, ref, atol=1e-4, rtol=1e-4), "f32 mismatch vs ref"

    # bf16 operand + bf16 output path (default perf configuration);
    # accumulation stays f32 via preferred_element_type.
    w1tb, w2tb, w3tb, cfgb = prepare_chromatin_params(
        w1, w2, w3, dtype=jnp.bfloat16)
    outb = chromatin_forward(x, w1tb, w2tb, w3tb,
                             out_dtype=jnp.bfloat16, **cfgb)
    outb = jax.block_until_ready(outb)
    assert outb.shape == (batch, n_peaks)
    assert jnp.allclose(outb.astype(jnp.float32), ref, atol=5e-2, rtol=0.0), \
        "bf16 mismatch vs reference"

    print("KERNEL_OK")
</pallas_src>

<mosaic_0001>
module attributes {stable_mosaic.version = 11 : i64} {
  func.func @_peaks_kernel(%arg0: i32, %arg1: i32, %arg2: memref<16x128xf32, #tpu.memory_space<vmem>>, %arg3: memref<128x128xf32, #tpu.memory_space<vmem>>, %arg4: memref<16x128xf32, #tpu.memory_space<vmem>>) attributes {dimension_semantics = [#tpu.dimension_semantics<parallel>, #tpu.dimension_semantics<parallel>], iteration_bounds = array<i64: 1, 1>, scalar_prefetch = 0 : i64, scratch_operands = 0 : i64, tpu.core_type = #tpu.core_type<tc>, window_params = [{transform_indices = @transform_0, window_bounds = array<i64: 16, 128>}, {transform_indices = @transform_1, window_bounds = array<i64: 128, 128>}, {transform_indices = @transform_2, window_bounds = array<i64: 16, 128>}]} {
    %c0 = arith.constant 0 : index
    %c0_0 = arith.constant 0 : index
    %0 = vector.load %arg2[%c0, %c0_0] : memref<16x128xf32, #tpu.memory_space<vmem>>, vector<16x128xf32>
    %c0_1 = arith.constant 0 : index
    %c0_2 = arith.constant 0 : index
    %1 = vector.load %arg3[%c0_1, %c0_2] : memref<128x128xf32, #tpu.memory_space<vmem>>, vector<128x128xf32>
    %cst = arith.constant dense<0.000000e+00> : vector<16x128xf32>
    %2 = tpu.matmul %0, %1, %cst {dimension_numbers = #tpu.dot_dimension_numbers<[1], [0], [0], [1], [0, 0, 1, 1], [], []>} : vector<16x128xf32>, vector<128x128xf32>, vector<16x128xf32> -> vector<16x128xf32>
    %cst_3 = arith.constant 5.000000e-01 : f32
    %3 = vector.broadcast %cst_3 : f32 to vector<16x128xf32>
    %4 = arith.mulf %3, %2 : vector<16x128xf32>
    %5 = math.tanh %4 : vector<16x128xf32>
    %cst_4 = arith.constant 5.000000e-01 : f32
    %6 = vector.broadcast %cst_4 : f32 to vector<16x128xf32>
    %7 = arith.mulf %6, %5 : vector<16x128xf32>
    %cst_5 = arith.constant 5.000000e-01 : f32
    %8 = vector.broadcast %cst_5 : f32 to vector<16x128xf32>
    %9 = arith.addf %7, %8 : vector<16x128xf32>
    %c0_6 = arith.constant 0 : index
    %c0_7 = arith.constant 0 : index
    %10 = vector.load %arg4[%c0_6, %c0_7] : memref<16x128xf32, #tpu.memory_space<vmem>>, vector<16x128xf32>
    tpu.vector_store %arg4[%c0_6, %c0_7], %9 {strides = array<i32>} : memref<16x128xf32, #tpu.memory_space<vmem>>, vector<16x128xf32>,
    return
  }
  func.func @transform_0(%arg0: i32, %arg1: i32) -> (i32, i32) {
    %c0_i32 = arith.constant 0 : i32
    %c0_i32_0 = arith.constant 0 : i32
    return %arg1, %c0_i32 : i32, i32
  }
  func.func @transform_1(%arg0: i32, %arg1: i32) -> (i32, i32) {
    %c0_i32 = arith.constant 0 : i32
    %c0_i32_0 = arith.constant 0 : i32
    return %c0_i32, %arg0 : i32, i32
  }
  func.func @transform_2(%arg0: i32, %arg1: i32) -> (i32, i32) {
    %c0_i32 = arith.constant 0 : i32
    return %arg1, %arg0 : i32, i32
  }
}

module attributes {stable_mosaic.version = 11 : i64} {
  func.func @_hidden_kernel(%arg0: i32, %arg1: i32, %arg2: memref<16x128xf32, #tpu.memory_space<vmem>>, %arg3: memref<128x128xf32, #tpu.memory_space<vmem>>, %arg4: memref<128x128xf32, #tpu.memory_space<vmem>>, %arg5: memref<16x128xf32, #tpu.memory_space<vmem>>, %arg6: memref<16x128xf32, #tpu.memory_space<vmem>>) attributes {dimension_semantics = [#tpu.dimension_semantics<parallel>, #tpu.dimension_semantics<arbitrary>], iteration_bounds = array<i64: 1, 1>, scalar_prefetch = 0 : i64, scratch_operands = 1 : i64, tpu.core_type = #tpu.core_type<tc>, window_params = [{transform_indices = @transform_0, window_bounds = array<i64: 16, 128>}, {transform_indices = @transform_1, window_bounds = array<i64: 128, 128>}, {pipeline_mode = #tpu.pipeline_mode<synchronous>, transform_indices = @transform_2, window_bounds = array<i64: 128, 128>}, {transform_indices = @transform_3, window_bounds = array<i64: 16, 128>}]} {
    %c0_i32 = arith.constant 0 : i32
    %0 = arith.cmpi eq, %arg1, %c0_i32 : i32
    %1 = arith.extui %0 : i1 to i32
    %c0_i32_0 = arith.constant 0 : i32
    %2 = arith.cmpi ne, %1, %c0_i32_0 : i32
    scf.if %2 {
      %cst_10 = arith.constant 0.000000e+00 : f32
      %12 = vector.broadcast %cst_10 : f32 to vector<16x128xf32>
      %c0_11 = arith.constant 0 : index
      %c0_12 = arith.constant 0 : index
      %13 = vector.load %arg6[%c0_11, %c0_12] : memref<16x128xf32, #tpu.memory_space<vmem>>, vector<16x128xf32>
      tpu.vector_store %arg6[%c0_11, %c0_12], %12 {strides = array<i32>} : memref<16x128xf32, #tpu.memory_space<vmem>>, vector<16x128xf32>,
    } else {
    }
    %c0 = arith.constant 0 : index
    %c0_1 = arith.constant 0 : index
    %3 = vector.load %arg6[%c0, %c0_1] : memref<16x128xf32, #tpu.memory_space<vmem>>, vector<16x128xf32>
    %c0_2 = arith.constant 0 : index
    %c0_3 = arith.constant 0 : index
    %4 = vector.load %arg2[%c0_2, %c0_3] : memref<16x128xf32, #tpu.memory_space<vmem>>, vector<16x128xf32>
    %c0_4 = arith.constant 0 : index
    %c0_5 = arith.constant 0 : index
    %5 = vector.load %arg3[%c0_4, %c0_5] : memref<128x128xf32, #tpu.memory_space<vmem>>, vector<128x128xf32>
    %cst = arith.constant dense<0.000000e+00> : vector<16x128xf32>
    %6 = tpu.matmul %4, %5, %cst {dimension_numbers = #tpu.dot_dimension_numbers<[1], [0], [0], [1], [0, 0, 1, 1], [], []>} : vector<16x128xf32>, vector<128x128xf32>, vector<16x128xf32> -> vector<16x128xf32>
    %7 = arith.addf %3, %6 : vector<16x128xf32>
    %c0_6 = arith.constant 0 : index
    %c0_7 = arith.constant 0 : index
    %8 = vector.load %arg6[%c0_6, %c0_7] : memref<16x128xf32, #tpu.memory_space<vmem>>, vector<16x128xf32>
    tpu.vector_store %arg6[%c0_6, %c0_7], %7 {strides = array<i32>} : memref<16x128xf32, #tpu.memory_space<vmem>>, vector<16x128xf32>,
    %c0_i32_8 = arith.constant 0 : i32
    %9 = arith.cmpi eq, %arg1, %c0_i32_8 : i32
    %10 = arith.extui %9 : i1 to i32
    %c0_i32_9 = arith.constant 0 : i32
    %11 = arith.cmpi ne, %10, %c0_i32_9 : i32
    scf.if %11 {
      %c0_10 = arith.constant 0 : index
      %c0_11 = arith.constant 0 : index
      %12 = vector.load %arg6[%c0_10, %c0_11] : memref<16x128xf32, #tpu.memory_space<vmem>>, vector<16x128xf32>
      %13 = math.tanh %12 : vector<16x128xf32>
      %c0_12 = arith.constant 0 : index
      %c0_13 = arith.constant 0 : index
      %14 = vector.load %arg4[%c0_12, %c0_13] : memref<128x128xf32, #tpu.memory_space<vmem>>, vector<128x128xf32>
      %cst_14 = arith.constant dense<0.000000e+00> : vector<16x128xf32>
      %15 = tpu.matmul %13, %14, %cst_14 {dimension_numbers = #tpu.dot_dimension_numbers<[1], [0], [0], [1], [0, 0, 1, 1], [], []>} : vector<16x128xf32>, vector<128x128xf32>, vector<16x128xf32> -> vector<16x128xf32>
      %cst_15 = arith.constant 5.000000e+00 : f32
      %16 = vector.broadcast %cst_15 : f32 to vector<16x128xf32>
      %17 = arith.cmpf ogt, %15, %16 : vector<16x128xf32>
      %cst_16 = arith.constant 5.000000e+00 : f32
      %18 = vector.broadcast %cst_16 : f32 to vector<16x128xf32>
      %19 = arith.minimumf %15, %18 : vector<16x128xf32>
      %20 = math.exp %19 : vector<16x128xf32>
      %21 = math.log1p %20 : vector<16x128xf32>
      %22 = arith.select %17, %15, %21 : vector<16x128xi1>, vector<16x128xf32>
      %c0_17 = arith.constant 0 : index
      %c0_18 = arith.constant 0 : index
      %23 = vector.load %arg5[%c0_17, %c0_18] : memref<16x128xf32, #tpu.memory_space<vmem>>, vector<16x128xf32>
      tpu.vector_store %arg5[%c0_17, %c0_18], %22 {strides = array<i32>} : memref<16x128xf32, #tpu.memory_space<vmem>>, vector<16x128xf32>,
    } else {
    }
    return
  }
  func.func @transform_0(%arg0: i32, %arg1: i32) -> (i32, i32) {
    %c0_i32 = arith.constant 0 : i32
    return %arg0, %arg1 : i32, i32
  }
  func.func @transform_1(%arg0: i32, %arg1: i32) -> (i32, i32) {
    %c0_i32 = arith.constant 0 : i32
    %c0_i32_0 = arith.constant 0 : i32
    return %arg1, %c0_i32 : i32, i32
  }
  func.func @transform_2(%arg0: i32, %arg1: i32) -> (i32, i32) {
    %c0_i32 = arith.constant 0 : i32
    %c0_i32_0 = arith.constant 0 : i32
    %c0_i32_1 = arith.constant 0 : i32
    return %c0_i32, %c0_i32_0 : i32, i32
  }
  func.func @transform_3(%arg0: i32, %arg1: i32) -> (i32, i32) {
    %c0_i32 = arith.constant 0 : i32
    %c0_i32_0 = arith.constant 0 : i32
    return %arg0, %c0_i32 : i32, i32
  }
}

</mosaic_0001>

<llo_original>
// kernel: chromatin_forward.3
$region0: #{chromatin_forward.3}
  #allocation0 [shape = 'u32[]', space=smem, size = 0x4, offset = 0x4, fixed_abs, tag = 'smem constant byte address 0x4 - core index']
  #allocation1 [shape = 'u32[144,128]{1,0:T(1,128)}', space=vmem, size = 0x12000, scoped, tag = 'internal scratch']
  %s0 = inlined_call_operand.vmem [shape: f32[16,128], index: 0, kind: input, shape index: {}]
  %s1 = inlined_call_operand.vmem [shape: f32[128,128], index: 1, kind: input, shape index: {}]
  %s2 = inlined_call_operand.vmem [shape: f32[16,128], index: 2, kind: output, shape index: {}]
  %s3 = sld [smem:[#allocation0]]
  $region18: #{chromatin_forward.3} parent=0
    _
  %s5 = ssub.s32 1, %s3
  %s6 = scalar_select 0, %s5, %s3
  // Predicated region
  $region2: #{chromatin_forward.3} parent=0 // pred_check
    _
  $region3: #{chromatin_forward.3} parent=0 // pred_check_branch
    %8 = sbr.rel (0) target = $region5
  $region4: #{chromatin_forward.3} parent=0 // pred_region
    _
  $region5: #{chromatin_forward.3} parent=0 // pred_fallthru
    _
  // Predicated region
  $region6: #{chromatin_forward.3} parent=0 // pred_check
    _
  $region7: #{chromatin_forward.3} parent=0 // pred_check_branch
    %10 = sbr.rel (0) target = $region9
  $region8: #{chromatin_forward.3} parent=0 // pred_region
    _
  $region9: #{chromatin_forward.3} parent=0 // pred_fallthru
    _
  %v11 = vld [vmem:[%s0] sm:$0xff]
  %v12 = vld [vmem:[%s0 + $0x8] sm:$0xff]
  %v13 = vld [vmem:[%s1] sm:$0xff]
  %v14 = vld [vmem:[%s1 + $0x8] sm:$0xff]
  %v15 = vld [vmem:[%s1 + $0x10] sm:$0xff]
  %v16 = vld [vmem:[%s1 + $0x18] sm:$0xff]
  %v17 = vld [vmem:[%s1 + $0x20] sm:$0xff]
  %v18 = vld [vmem:[%s1 + $0x28] sm:$0xff]
  %v19 = vld [vmem:[%s1 + $0x30] sm:$0xff]
  %v20 = vld [vmem:[%s1 + $0x38] sm:$0xff]
  %v21 = vld [vmem:[%s1 + $0x40] sm:$0xff]
  %v22 = vld [vmem:[%s1 + $0x48] sm:$0xff]
  %v23 = vld [vmem:[%s1 + $0x50] sm:$0xff]
  %v24 = vld [vmem:[%s1 + $0x58] sm:$0xff]
  %v25 = vld [vmem:[%s1 + $0x60] sm:$0xff]
  %v26 = vld [vmem:[%s1 + $0x68] sm:$0xff]
  %v27 = vld [vmem:[%s1 + $0x70] sm:$0xff]
  %v28 = vld [vmem:[%s1 + $0x78] sm:$0xff]
  %29 = vmatprep.subr.mxu0 0.0
  %30 = vmatpush1.msra.mxu0 %v13
  %31 = vmatprep.subr.mxu0 0.0
  %32 = vmatpush1.msra.mxu0 %v14
  %33 = vmatprep.subr.mxu0 0.0
  %34 = vmatpush1.msra.mxu0 %v15
  %35 = vmatprep.subr.mxu0 0.0
  %36 = vmatpush1.msra.mxu0 %v16
  %37 = vmatprep.subr.mxu0 0.0
  %38 = vmatpush1.msra.mxu0 %v17
  %39 = vmatprep.subr.mxu0 0.0
  %40 = vmatpush1.msra.mxu0 %v18
  %41 = vmatprep.subr.mxu0 0.0
  %42 = vmatpush1.msra.mxu0 %v19
  %43 = vmatprep.subr.mxu0 0.0
  %44 = vmatpush1.msra.mxu0 %v20
  %45 = vmatprep.subr.mxu0 0.0
  %46 = vmatpush1.msra.mxu0 %v21
  %47 = vmatprep.subr.mxu0 0.0
  %48 = vmatpush1.msra.mxu0 %v22
  %49 = vmatprep.subr.mxu0 0.0
  %50 = vmatpush1.msra.mxu0 %v23
  %51 = vmatprep.subr.mxu0 0.0
  %52 = vmatpush1.msra.mxu0 %v24
  %53 = vmatprep.subr.mxu0 0.0
  %54 = vmatpush1.msra.mxu0 %v25
  %55 = vmatprep.subr.mxu0 0.0
  %56 = vmatpush1.msra.mxu0 %v26
  %57 = vmatprep.subr.mxu0 0.0
  %58 = vmatpush1.msra.mxu0 %v27
  %59 = vmatprep.subr.mxu0 0.0
  %60 = vmatpush1.msra.mxu0 %v28
  %61 = vmatprep.subr.mxu0 0.0
  %62 = vmatpush1.msra.mxu0 0.0
  %63 = vmatprep.subr.mxu0 0.0
  %64 = vmatpush1.msra.mxu0 0.0
  %65 = vmatprep.subr.mxu0 0.0
  %66 = vmatpush1.msra.mxu0 0.0
  %67 = vmatprep.subr.mxu0 0.0
  %68 = vmatpush1.msra.mxu0 0.0
  %69 = vmatprep.subr.mxu0 0.0
  %70 = vmatpush1.msra.mxu0 0.0
  %71 = vmatprep.subr.mxu0 0.0
  %72 = vmatpush1.msra.mxu0 0.0
  %73 = vmatprep.subr.mxu0 0.0
  %74 = vmatpush1.msra.mxu0 0.0
  %75 = vmatprep.subr.mxu0 0.0
  %76 = vmatpush1.msra.mxu0 0.0
  %77 = vmatprep.subr.mxu0 0.0
  %78 = vmatpush1.msra.mxu0 0.0
  %79 = vmatprep.subr.mxu0 0.0
  %80 = vmatpush1.msra.mxu0 0.0
  %81 = vmatprep.subr.mxu0 0.0
  %82 = vmatpush1.msra.mxu0 0.0
  %83 = vmatprep.subr.mxu0 0.0
  %84 = vmatpush1.msra.mxu0 0.0
  %85 = vmatprep.subr.mxu0 0.0
  %86 = vmatpush1.msra.mxu0 0.0
  %87 = vmatprep.subr.mxu0 0.0
  %88 = vmatpush1.msra.mxu0 0.0
  %89 = vmatprep.subr.mxu0 0.0
  %90 = vmatpush1.msra.mxu0 0.0
  %91 = vmatprep.subr.mxu0 0.0
  %92 = vmatpush1.msra.mxu0 0.0
  %93 = vmatprep.mubr.f32.mxu0 0.0
  %94 = vmatmul.mubr.f32.gmra.mrb[0].mxu0 %v11
  %v95 = vpop.f32.mrb[0].mxu0
  %v96 = vadd.f32 0.0, %v95
  %v97 = vpop.f32.mrb[0].mxu0
  %98 = vmatprep.mubr.f32.mxu0 0.0
  %99 = vmatmul.mubr.f32.gmra.mrb[0].mxu0 %v12
  %v100 = vpop.f32.mrb[0].mxu0
  %v101 = vadd.f32 0.0, %v100
  %v102 = vpop.f32.mrb[0].mxu0
  %103 = vdwg.mxu0
  %v104 = vmul.f32 %v96, 0.5
  %v105 = vmul.f32 %v101, 0.5
  %v106 = vtanh.pop %v104
  %v107 = vtanh.pop %v105
  %v108 = vmul.f32 %v106, 0.5
  %v109 = vmul.f32 %v107, 0.5
  %v110 = vadd.f32 %v108, 0.5
  %v111 = vadd.f32 %v109, 0.5
  %112 = vst [vmem:[%s2] sm:$0xff] %v110
  %113 = vst [vmem:[%s2 + $0x8] sm:$0xff] %v111
  // Predicated region
  $region10: #{chromatin_forward.3} parent=0 // pred_check
    _
  $region11: #{chromatin_forward.3} parent=0 // pred_check_branch
    %115 = sbr.rel (0) target = $region13
  $region12: #{chromatin_forward.3} parent=0 // pred_region
    _
  $region13: #{chromatin_forward.3} parent=0 // pred_fallthru
    _
  // Predicated region
  $region14: #{chromatin_forward.3} parent=0 // pred_check
    _
  $region15: #{chromatin_forward.3} parent=0 // pred_check_branch
    %117 = sbr.rel (0) target = $region17
  $region16: #{chromatin_forward.3} parent=0 // pred_region
    _
  $region17: #{chromatin_forward.3} parent=0 // pred_fallthru
    _

// kernel: chromatin_forward.2
$region0: #{chromatin_forward.2}
  #allocation0 [shape = 'u32[]', space=smem, size = 0x4, offset = 0x4, fixed_abs, tag = 'smem constant byte address 0x4 - core index']
  #allocation1 [shape = 'u32[144,128]{1,0:T(1,128)}', space=vmem, size = 0x12000, scoped, tag = 'internal scratch']
  #allocation2 [shape = 'f32[16,128]{1,0:T(8,128)}', space=vmem, size = 0x2000, scoped, tag = 'scratch operand']
  %s0 = inlined_call_operand.vmem [shape: f32[16,128], index: 0, kind: input, shape index: {}]
  %s1 = inlined_call_operand.hbm [shape: f32[128,128], index: 1, kind: input, shape index: {}]
  %s2 = inlined_call_operand.hbm [shape: f32[128,128], index: 2, kind: input, shape index: {}]
  %s3 = inlined_call_operand.vmem [shape: f32[16,128], index: 3, kind: output, shape index: {}]
  %s4 = sld [smem:[#allocation0]]
  $region38: #{chromatin_forward.2} parent=0
    _
  %s6 = ssub.s32 1, %s4
  %s7 = scalar_select 0, %s6, %s4
  $region1: #{chromatin_forward.2} parent=0
    #allocation3 [shape = 'u8[65536]{0}', space=vmem, size = 0x10000, scoped, tag = 'input window, operand 1, single buffered']
    #allocation4 [shape = 's32[1]{0}', space=sflag, size = 0x4, scoped, tag = 'scoped memory for chromatin_forward.2']
    #allocation5 [shape = 'u8[65536]{0}', space=vmem, size = 0x10000, scoped, tag = 'input window, operand 2, single buffered']
    #allocation6 [shape = 's32[1]{0}', space=sflag, size = 0x4, scoped, tag = 'scoped memory for chromatin_forward.2']
    %8 = vsyncpa [#allocation4], 0
    %9 = vsyncpa [#allocation6], 0
    // Predicated region
    $region2: #{chromatin_forward.2} parent=1 // pred_check
      _
    $region3: #{chromatin_forward.2} parent=1 // pred_check_branch
      %11 = sbr.rel (0) target = $region5
    $region4: #{chromatin_forward.2} parent=1 // pred_region
      _
    $region5: #{chromatin_forward.2} parent=1 // pred_fallthru
      _
    // Predicated region
    $region6: #{chromatin_forward.2} parent=1 // pred_check
      _
    $region7: #{chromatin_forward.2} parent=1 // pred_check_branch
      %13 = sbr.rel (0) target = $region9
    $region8: #{chromatin_forward.2} parent=1 // pred_region
      %s15 = ssub.s32 2048, 2048
      %16 = vsyncadd [#allocation4], %s15
      %s17 = sshll.u32 [#allocation3], 4
      %s18 = int_to_ptr.vmem [resolvable:$true] %s17
      %23 = dma.hbm_to_vmem [thread:$0]  %s1, 2048, %s18, [#allocation4], 128, 128, 8
    $region9: #{chromatin_forward.2} parent=1 // pred_fallthru
      _
    // Predicated region
    $region10: #{chromatin_forward.2} parent=1 // pred_check
      _
    $region11: #{chromatin_forward.2} parent=1 // pred_check_branch
      %25 = sbr.rel (0) target = $region13
    $region12: #{chromatin_forward.2} parent=1 // pred_region
      %s27 = ssub.s32 2048, 2048
      %28 = vsyncadd [#allocation6], %s27
      %s29 = sshll.u32 [#allocation5], 4
      %s30 = int_to_ptr.vmem [resolvable:$true] %s29
      %35 = dma.hbm_to_vmem [thread:$0]  %s2, 2048, %s30, [#allocation6], 128, 128, 8
    $region13: #{chromatin_forward.2} parent=1 // pred_fallthru
      _
    // Predicated region
    $region14: #{chromatin_forward.2} parent=1 // pred_check
      _
    $region15: #{chromatin_forward.2} parent=1 // pred_check_branch
      %37 = sbr.rel (0) target = $region17
    $region16: #{chromatin_forward.2} parent=1 // pred_region
      %38 = dma.done [#allocation4], 2048
    $region17: #{chromatin_forward.2} parent=1 // pred_fallthru
      _
    // Predicated region
    $region18: #{chromatin_forward.2} parent=1 // pred_check
      _
    $region19: #{chromatin_forward.2} parent=1 // pred_check_branch
      %40 = sbr.rel (0) target = $region21
    $region20: #{chromatin_forward.2} parent=1 // pred_region
      %41 = dma.done [#allocation6], 2048
    $region21: #{chromatin_forward.2} parent=1 // pred_fallthru
      _
    %p42 = scmp.eq.s32.totalorder 0, 0
    // Predicated region
    $region22: #{chromatin_forward.2} parent=1 // pred_check
      %p43 = pneg %p42
    $region23: #{chromatin_forward.2} parent=1 // pred_check_branch
      %45 = sbr.rel (%p43) target = $region25
    $region24: #{chromatin_forward.2} parent=1 // pred_region
      %46 = vst [vmem:[#allocation2] sm:$0xff] 0.0
      %47 = vst [vmem:[#allocation2 + $0x8] sm:$0xff] 0.0
    $region25: #{chromatin_forward.2} parent=1 // pred_fallthru
      _
    %v48 = vld [vmem:[#allocation2] sm:$0xff]
    %v49 = vld [vmem:[#allocation2 + $0x8] sm:$0xff]
    %v50 = vld [vmem:[%s0] sm:$0xff]
    %v51 = vld [vmem:[%s0 + $0x8] sm:$0xff]
    %v52 = vld [vmem:[#allocation3] sm:$0xff]
    %v53 = vld [vmem:[#allocation3 + $0x8] sm:$0xff]
    %v54 = vld [vmem:[#allocation3 + $0x10] sm:$0xff]
    %v55 = vld [vmem:[#allocation3 + $0x18] sm:$0xff]
    %v56 = vld [vmem:[#allocation3 + $0x20] sm:$0xff]
    %v57 = vld [vmem:[#allocation3 + $0x28] sm:$0xff]
    %v58 = vld [vmem:[#allocation3 + $0x30] sm:$0xff]
    %v59 = vld [vmem:[#allocation3 + $0x38] sm:$0xff]
    %v60 = vld [vmem:[#allocation3 + $0x40] sm:$0xff]
    %v61 = vld [vmem:[#allocation3 + $0x48] sm:$0xff]
    %v62 = vld [vmem:[#allocation3 + $0x50] sm:$0xff]
    %v63 = vld [vmem:[#allocation3 + $0x58] sm:$0xff]
    %v64 = vld [vmem:[#allocation3 + $0x60] sm:$0xff]
    %v65 = vld [vmem:[#allocation3 + $0x68] sm:$0xff]
    %v66 = vld [vmem:[#allocation3 + $0x70] sm:$0xff]
    %v67 = vld [vmem:[#allocation3 + $0x78] sm:$0xff]
    %68 = vmatprep.subr.mxu0 0.0
    %69 = vmatpush1.msra.mxu0 %v52
    %70 = vmatprep.subr.mxu0 0.0
    %71 = vmatpush1.msra.mxu0 %v53
    %72 = vmatprep.subr.mxu0 0.0
    %73 = vmatpush1.msra.mxu0 %v54
    %74 = vmatprep.subr.mxu0 0.0
    %75 = vmatpush1.msra.mxu0 %v55
    %76 = vmatprep.subr.mxu0 0.0
    %77 = vmatpush1.msra.mxu0 %v56
    %78 = vmatprep.subr.mxu0 0.0
    %79 = vmatpush1.msra.mxu0 %v57
    %80 = vmatprep.subr.mxu0 0.0
    %81 = vmatpush1.msra.mxu0 %v58
    %82 = vmatprep.subr.mxu0 0.0
    %83 = vmatpush1.msra.mxu0 %v59
    %84 = vmatprep.subr.mxu0 0.0
    %85 = vmatpush1.msra.mxu0 %v60
    %86 = vmatprep.subr.mxu0 0.0
    %87 = vmatpush1.msra.mxu0 %v61
    %88 = vmatprep.subr.mxu0 0.0
    %89 = vmatpush1.msra.mxu0 %v62
    %90 = vmatprep.subr.mxu0 0.0
    %91 = vmatpush1.msra.mxu0 %v63
    %92 = vmatprep.subr.mxu0 0.0
    %93 = vmatpush1.msra.mxu0 %v64
    %94 = vmatprep.subr.mxu0 0.0
    %95 = vmatpush1.msra.mxu0 %v65
    %96 = vmatprep.subr.mxu0 0.0
    %97 = vmatpush1.msra.mxu0 %v66
    %98 = vmatprep.subr.mxu0 0.0
    %99 = vmatpush1.msra.mxu0 %v67
    %100 = vmatprep.subr.mxu0 0.0
    %101 = vmatpush1.msra.mxu0 0.0
    %102 = vmatprep.subr.mxu0 0.0
    %103 = vmatpush1.msra.mxu0 0.0
    %104 = vmatprep.subr.mxu0 0.0
    %105 = vmatpush1.msra.mxu0 0.0
    %106 = vmatprep.subr.mxu0 0.0
    %107 = vmatpush1.msra.mxu0 0.0
    %108 = vmatprep.subr.mxu0 0.0
    %109 = vmatpush1.msra.mxu0 0.0
    %110 = vmatprep.subr.mxu0 0.0
    %111 = vmatpush1.msra.mxu0 0.0
    %112 = vmatprep.subr.mxu0 0.0
    %113 = vmatpush1.msra.mxu0 0.0
    %114 = vmatprep.subr.mxu0 0.0
    %115 = vmatpush1.msra.mxu0 0.0
    %116 = vmatprep.subr.mxu0 0.0
    %117 = vmatpush1.msra.mxu0 0.0
    %118 = vmatprep.subr.mxu0 0.0
    %119 = vmatpush1.msra.mxu0 0.0
    %120 = vmatprep.subr.mxu0 0.0
    %121 = vmatpush1.msra.mxu0 0.0
    %122 = vmatprep.subr.mxu0 0.0
    %123 = vmatpush1.msra.mxu0 0.0
    %124 = vmatprep.subr.mxu0 0.0
    %125 = vmatpush1.msra.mxu0 0.0
    %126 = vmatprep.subr.mxu0 0.0
    %127 = vmatpush1.msra.mxu0 0.0
    %128 = vmatprep.subr.mxu0 0.0
    %129 = vmatpush1.msra.mxu0 0.0
    %130 = vmatprep.subr.mxu0 0.0
    %131 = vmatpush1.msra.mxu0 0.0
    %132 = vmatprep.mubr.f32.mxu0 0.0
    %133 = vmatmul.mubr.f32.gmra.mrb[0].mxu0 %v50
    %v134 = vpop.f32.mrb[0].mxu0
    %v135 = vadd.f32 0.0, %v134
    %v136 = vpop.f32.mrb[0].mxu0
    %137 = vmatprep.mubr.f32.mxu0 0.0
    %138 = vmatmul.mubr.f32.gmra.mrb[0].mxu0 %v51
    %v139 = vpop.f32.mrb[0].mxu0
    %v140 = vadd.f32 0.0, %v139
    %v141 = vpop.f32.mrb[0].mxu0
    %142 = vdwg.mxu0
    %v143 = vadd.f32 %v48, %v135
    %v144 = vadd.f32 %v49, %v140
    %145 = vst [vmem:[#allocation2] sm:$0xff] %v143
    %146 = vst [vmem:[#allocation2 + $0x8] sm:$0xff] %v144
    // Predicated region
    $region26: #{chromatin_forward.2} parent=1 // pred_check
      %p147 = pneg %p42
    $region27: #{chromatin_forward.2} parent=1 // pred_check_branch
      %149 = sbr.rel (%p147) target = $region29
    $region28: #{chromatin_forward.2} parent=1 // pred_region
      %v150 = vld [vmem:[#allocation2] sm:$0xff]
      %v151 = vld [vmem:[#allocation2 + $0x8] sm:$0xff]
      %v152 = vtanh.pop %v150
      %v153 = vtanh.pop %v151
      %v154 = vld [vmem:[#allocation5] sm:$0xff]
      %v155 = vld [vmem:[#allocation5 + $0x8] sm:$0xff]
      %v156 = vld [vmem:[#allocation5 + $0x10] sm:$0xff]
      %v157 = vld [vmem:[#allocation5 + $0x18] sm:$0xff]
      %v158 = vld [vmem:[#allocation5 + $0x20] sm:$0xff]
      %v159 = vld [vmem:[#allocation5 + $0x28] sm:$0xff]
      %v160 = vld [vmem:[#allocation5 + $0x30] sm:$0xff]
      %v161 = vld [vmem:[#allocation5 + $0x38] sm:$0xff]
      %v162 = vld [vmem:[#allocation5 + $0x40] sm:$0xff]
      %v163 = vld [vmem:[#allocation5 + $0x48] sm:$0xff]
      %v164 = vld [vmem:[#allocation5 + $0x50] sm:$0xff]
      %v165 = vld [vmem:[#allocation5 + $0x58] sm:$0xff]
      %v166 = vld [vmem:[#allocation5 + $0x60] sm:$0xff]
      %v167 = vld [vmem:[#allocation5 + $0x68] sm:$0xff]
      %v168 = vld [vmem:[#allocation5 + $0x70] sm:$0xff]
      %v169 = vld [vmem:[#allocation5 + $0x78] sm:$0xff]
      %170 = vmatprep.subr.mxu0 0.0
      %171 = vmatpush1.msra.mxu0 %v154
      %172 = vmatprep.subr.mxu0 0.0
      %173 = vmatpush1.msra.mxu0 %v155
      %174 = vmatprep.subr.mxu0 0.0
      %175 = vmatpush1.msra.mxu0 %v156
      %176 = vmatprep.subr.mxu0 0.0
      %177 = vmatpush1.msra.mxu0 %v157
      %178 = vmatprep.subr.mxu0 0.0
      %179 = vmatpush1.msra.mxu0 %v158
      %180 = vmatprep.subr.mxu0 0.0
      %181 = vmatpush1.msra.mxu0 %v159
      %182 = vmatprep.subr.mxu0 0.0
      %183 = vmatpush1.msra.mxu0 %v160
      %184 = vmatprep.subr.mxu0 0.0
      %185 = vmatpush1.msra.mxu0 %v161
      %186 = vmatprep.subr.mxu0 0.0
      %187 = vmatpush1.msra.mxu0 %v162
      %188 = vmatprep.subr.mxu0 0.0
      %189 = vmatpush1.msra.mxu0 %v163
      %190 = vmatprep.subr.mxu0 0.0
      %191 = vmatpush1.msra.mxu0 %v164
      %192 = vmatprep.subr.mxu0 0.0
      %193 = vmatpush1.msra.mxu0 %v165
      %194 = vmatprep.subr.mxu0 0.0
      %195 = vmatpush1.msra.mxu0 %v166
      %196 = vmatprep.subr.mxu0 0.0
      %197 = vmatpush1.msra.mxu0 %v167
      %198 = vmatprep.subr.mxu0 0.0
      %199 = vmatpush1.msra.mxu0 %v168
      %200 = vmatprep.subr.mxu0 0.0
      %201 = vmatpush1.msra.mxu0 %v169
      %202 = vmatprep.subr.mxu0 0.0
      %203 = vmatpush1.msra.mxu0 0.0
      %204 = vmatprep.subr.mxu0 0.0
      %205 = vmatpush1.msra.mxu0 0.0
      %206 = vmatprep.subr.mxu0 0.0
      %207 = vmatpush1.msra.mxu0 0.0
      %208 = vmatprep.subr.mxu0 0.0
      %209 = vmatpush1.msra.mxu0 0.0
      %210 = vmatprep.subr.mxu0 0.0
      %211 = vmatpush1.msra.mxu0 0.0
      %212 = vmatprep.subr.mxu0 0.0
      %213 = vmatpush1.msra.mxu0 0.0
      %214 = vmatprep.subr.mxu0 0.0
      %215 = vmatpush1.msra.mxu0 0.0
      %216 = vmatprep.subr.mxu0 0.0
      %217 = vmatpush1.msra.mxu0 0.0
      %218 = vmatprep.subr.mxu0 0.0
      %219 = vmatpush1.msra.mxu0 0.0
      %220 = vmatprep.subr.mxu0 0.0
      %221 = vmatpush1.msra.mxu0 0.0
      %222 = vmatprep.subr.mxu0 0.0
      %223 = vmatpush1.msra.mxu0 0.0
      %224 = vmatprep.subr.mxu0 0.0
      %225 = vmatpush1.msra.mxu0 0.0
      %226 = vmatprep.subr.mxu0 0.0
      %227 = vmatpush1.msra.mxu0 0.0
      %228 = vmatprep.subr.mxu0 0.0
      %229 = vmatpush1.msra.mxu0 0.0
      %230 = vmatprep.subr.mxu0 0.0
      %231 = vmatpush1.msra.mxu0 0.0
      %232 = vmatprep.subr.mxu0 0.0
      %233 = vmatpush1.msra.mxu0 0.0
      %234 = vmatprep.mubr.f32.mxu0 0.0
      %235 = vmatmul.mubr.f32.gmra.mrb[0].mxu0 %v152
      %v236 = vpop.f32.mrb[0].mxu0
      %v237 = vadd.f32 0.0, %v236
      %v238 = vpop.f32.mrb[0].mxu0
      %239 = vmatprep.mubr.f32.mxu0 0.0
      %240 = vmatmul.mubr.f32.gmra.mrb[0].mxu0 %v153
      %v241 = vpop.f32.mrb[0].mxu0
      %v242 = vadd.f32 0.0, %v241
      %v243 = vpop.f32.mrb[0].mxu0
      %244 = vdwg.mxu0
      %vm245 = vcmp.gt.f32.partialorder %v237, 5.0
      %vm246 = vcmp.gt.f32.partialorder %v242, 5.0
      %v247 = vmin.f32 %v237, 5.0
      %v248 = vmin.f32 %v242, 5.0
      %v249 = vmul.f32 %v247, 1.442695
      %v250 = vpow.pop %v249
      %v251 = vmul.f32 %v248, 1.442695
      %v252 = vpow.pop %v251
      %v253 = vadd.f32 %v250, 1.0
      %v254 = vlog2.pop %v253
      %v255 = vmul.f32 %v254, 0.6931472
      %v256 = vmul.f32 -0.5, %v250
      %v257 = vadd.f32 %v256, 1.0
      %v258 = vmul.f32 %v257, %v250
      %v259 = vand.u32 2147483647, %v250
      %vm260 = vcmp.lt.f32.partialorder %v259, 0.0004427343
      %v261 = vsel %vm260, %v258, %v255
      %v262 = vadd.f32 %v252, 1.0
      %v263 = vlog2.pop %v262
      %v264 = vmul.f32 %v263, 0.6931472
      %v265 = vmul.f32 -0.5, %v252
      %v266 = vadd.f32 %v265, 1.0
      %v267 = vmul.f32 %v266, %v252
      %v268 = vand.u32 2147483647, %v252
      %vm269 = vcmp.lt.f32.partialorder %v268, 0.0004427343
      %v270 = vsel %vm269, %v267, %v264
      %v271 = vsel %vm245, %v237, %v261
      %v272 = vsel %vm246, %v242, %v270
      %273 = vst [vmem:[%s3] sm:$0xff] %v271
      %274 = vst [vmem:[%s3 + $0x8] sm:$0xff] %v272
    $region29: #{chromatin_forward.2} parent=1 // pred_fallthru
      _
    // Predicated region
    $region30: #{chromatin_forward.2} parent=1 // pred_check
      _
    $region31: #{chromatin_forward.2} parent=1 // pred_check_branch
      %276 = sbr.rel (0) target = $region33
    $region32: #{chromatin_forward.2} parent=1 // pred_region
      _
    $region33: #{chromatin_forward.2} parent=1 // pred_fallthru
      _
    // Predicated region
    $region34: #{chromatin_forward.2} parent=1 // pred_check
      _
    $region35: #{chromatin_forward.2} parent=1 // pred_check_branch
      %278 = sbr.rel (0) target = $region37
    $region36: #{chromatin_forward.2} parent=1 // pred_region
      _
    $region37: #{chromatin_forward.2} parent=1 // pred_fallthru
      _
    %279 = vsyncpa [#allocation4], 1
    %280 = vsyncpa [#allocation6], 1

</llo_original>
